<compile_context>
chip_gen: v7x
topology: tpu7x:2x2x1
jax: 0.10.0
libtpu: 0.0.40
codegen_flags: <defaults>
</compile_context>

<pallas_src>
import functools

import numpy as np
import jax
import jax.numpy as jnp
from jax import lax
from jax.experimental import pallas as pl
from jax.experimental.pallas import tpu as pltpu


def _update_index_matrix(batch_size: int, linear: bool = True) -> np.ndarray:
    """NumPy port of tl/utils/loss.py::_update_index_matrix (host-side glue)."""
    m = np.zeros((2 * batch_size, 2 * batch_size), dtype=np.float32)
    if linear:
        for i in range(batch_size):
            s1, s2 = i, (i + 1) % batch_size
            t1, t2 = s1 + batch_size, s2 + batch_size
            m[s1, s2] = 1.0 / float(batch_size)
            m[t1, t2] = 1.0 / float(batch_size)
            m[s1, t2] = -1.0 / float(batch_size)
            m[s2, t1] = -1.0 / float(batch_size)
    else:
        for i in range(batch_size):
            for j in range(batch_size):
                if i != j:
                    m[i, j] = 1.0 / float(batch_size * (batch_size - 1))
                    m[i + batch_size, j + batch_size] = 1.0 / float(
                        batch_size * (batch_size - 1))
        for i in range(batch_size):
            for j in range(batch_size):
                m[i, j + batch_size] = -1.0 / float(batch_size * batch_size)
                m[i + batch_size, j] = -1.0 / float(batch_size * batch_size)
    return m


# ---------------------------------------------------------------------------
# kernel
# ---------------------------------------------------------------------------
def _jmmd_kernel(coef_ref, feat_ref, km_ref, *,
                 layers_per_step: int, num_kernels: int, steps_per_partial: int,
                 pow2_ladder: bool, true_rows: int, n_pad: int,
                 gram_dtype, eps: float):
    """Grid = (partials, layer_steps).  One step multiplies `layers_per_step`
    layers' Gaussian-kernel sums into the resident (2Bp, 2Bp) output block.
    Each partial (leading "parallel" axis) owns its own output block so the
    layer product can be sharded across TensorCores and recombined in the
    wrapper with a single elementwise multiply."""
    p = pl.program_id(0)
    s = pl.program_id(1)
    layer0 = (p * steps_per_partial + s) * layers_per_step
    inv_rows = 1.0 / float(true_rows)

    def layer_kernel_sum(j):
        # j: local layer index within this step (static 0 or fori_loop-traced).
        x_in = feat_ref[j]                           # (2Bp, D), f32 or bf16 slab
        xf = x_in.astype(jnp.float32)                # elementwise phase stays f32
        # Center features: pairwise distances are translation invariant; this
        # removes catastrophic cancellation in the bandwidth statistic and in
        # dist itself.  Padded rows are exactly zero, so summing all rows and
        # dividing by the true row count gives the true mean.
        xbar = jnp.sum(xf, axis=0, keepdims=True) * inv_rows     # (1, D)
        xc = xf - xbar
        xg = xc.astype(gram_dtype)                   # bf16 feeds the MXU; no-op on f32 path
        gram = lax.dot_general(
            xg, xg, dimension_numbers=(((1,), (1,)), ((), ())),
            preferred_element_type=jnp.float32)      # (2Bp, 2Bp) f32 accumulate
        sq = jnp.sum(xc * xc, axis=-1, keepdims=True)            # (2Bp, 1) f32
        # ||xi - xj||^2 = ||xi||^2 + ||xj||^2 - 2 xi.xj ; clamp fp cancellation
        dist = jnp.maximum(sq + sq.T - 2.0 * gram, 0.0)

        # analytic bandwidth: mean over REAL pairs of ||xi-xj||^2
        #   = 2 * mean_real ||xc_i||^2.  Padded rows are exactly -xbar after
        # centering, so subtract their known contribution instead of masking.
        sum_sq = jnp.sum(sq)
        if n_pad:
            sum_sq = sum_sq - float(n_pad) * jnp.sum(xbar * xbar)
        mean_dist = 2.0 * jnp.maximum(sum_sq * inv_rows, 0.0) + eps
        inv_md = 1.0 / mean_dist                     # exact scalar (feeds the exp)

        base = (layer0 + j) * num_kernels            # flattened (L*K,) SMEM coefs
        if pow2_ladder:
            # alphas form a 2^k ladder: ONE EUP exp, the rest by squaring (VPU).
            c = coef_ref[base + num_kernels - 1] * inv_md   # coef of LARGEST alpha
            t = jnp.exp(dist * c)
            lk = t
            for _ in range(num_kernels - 1):
                t = t * t                            # alpha halves each squaring
                lk = lk + t
        else:
            # general path: scalar coefficient per kernel, no full-tile divide.
            lk = jnp.zeros_like(dist)
            for k in range(num_kernels):
                c = coef_ref[base + k] * inv_md
                lk = lk + jnp.exp(dist * c)
        return lk

    # Layer 0 of this step: init the resident product on the first step of the
    # partial, otherwise multiply into it (no ones-init pass).
    lk0 = layer_kernel_sum(0)

    @pl.when(s == 0)
    def _init():
        km_ref[...] = lk0

    @pl.when(s > 0)
    def _accum():
        km_ref[...] = km_ref[...] * lk0

    # Remaining layers of this step via fori_loop: bounds the live range of the
    # per-layer (2Bp,2Bp) temporaries (gram/dist/t/lk) to one layer at a time.
    if layers_per_step > 1:
        def body(j, carry):
            km_ref[...] = km_ref[...] * layer_kernel_sum(j)
            return carry
        lax.fori_loop(1, layers_per_step, body, 0)


# ---------------------------------------------------------------------------
# wrapper helpers
# ---------------------------------------------------------------------------
def _padded_rows(two_b: int) -> int:
    """Pad the (source+target) row axis to a layout-friendly size: lane-dense
    128-multiple once it is large enough (>=64), otherwise sublane multiple."""
    if two_b >= 64:
        return ((two_b + 127) // 128) * 128
    return ((two_b + 7) // 8) * 8


def _pick_layers_per_step(num_layers: int, bytes_per_layer: int,
                          target_bytes: int) -> int:
    """Largest divisor of num_layers whose feature block fits target_bytes while
    keeping >= 2 grid steps (so DMA/compute pipelining stays enabled)."""
    divisors = [d for d in range(1, num_layers + 1) if num_layers % d == 0]
    if num_layers >= 2:
        divisors = [d for d in divisors if num_layers // d >= 2]
    fitting = [d for d in divisors if d * bytes_per_layer <= target_bytes]
    return max(fitting) if fitting else min(divisors)


def _jmmd_partial_products(features: jax.Array, coefs: jax.Array, *,
                           num_kernels: int, pow2_ladder: bool, true_rows: int,
                           gram_dtype) -> jax.Array:
    """Returns (P, 2Bp, 2Bp) partial layer-products (P in {1, 2})."""
    num_layers, two_bp, d = features.shape
    itemsize = features.dtype.itemsize

    # chip-aware VMEM budget (leave headroom for compiler internal scratch)
    try:
        vmem_cap = int(pltpu.get_tpu_info().vmem_capacity_bytes)
    except Exception:  # pragma: no cover - conservative fallback
        vmem_cap = 64 << 20
    vmem_budget = (vmem_cap * 3) // 4                # ~48 MiB v7x, ~96 MiB v5e/v6e
    # ~1-4 MiB blocks reach ~85% of HBM roofline; halve the target on 64-MiB parts
    target_block = (2 << 20) if vmem_budget <= (48 << 20) else (4 << 20)

    bytes_per_layer = two_bp * d * itemsize
    lps = _pick_layers_per_step(num_layers, bytes_per_layer, target_block)
    steps = num_layers // lps
    # split the layer product into 2 partials when possible: leading "parallel"
    # grid axis can be sharded across TensorCores on megacore parts (v7x).
    partials = 2 if (steps >= 2 and steps % 2 == 0) else 1
    spp = steps // partials
    fused = (partials == 1 and spp == 1)             # whole problem in one step

    km_bytes = two_bp * two_bp * 4
    feat_block_bytes = lps * bytes_per_layer
    n_feat_bufs = 1 if fused else 2                  # pipelined feature slabs
    per_layer_tmp = 3 * two_bp * d * 4 + 6 * km_bytes   # xf/xc/xg + gram/dist/t/lk/sq
    needed = (n_feat_bufs * feat_block_bytes + per_layer_tmp
              + 2 * km_bytes + (1 << 20))
    vmem_limit = int(min(vmem_budget, max(2 * needed, 16 << 20)))

    kernel = functools.partial(
        _jmmd_kernel, layers_per_step=lps, num_kernels=num_kernels,
        steps_per_partial=spp, pow2_ladder=pow2_ladder, true_rows=true_rows,
        n_pad=two_bp - true_rows, gram_dtype=gram_dtype, eps=1e-12)

    feat_kwargs = {}
    if fused:
        # single grid step (single-layer workloads): double-buffering the only
        # feature slab is pure VMEM waste.
        feat_kwargs["pipeline_mode"] = pl.Buffered(1)
    feat_spec = pl.BlockSpec((lps, two_bp, d),
                             lambda p, s: (p * spp + s, 0, 0),
                             **feat_kwargs)

    out = pl.pallas_call(
        kernel,
        out_shape=jax.ShapeDtypeStruct((partials, two_bp, two_bp), jnp.float32),
        grid_spec=pltpu.PrefetchScalarGridSpec(
            num_scalar_prefetch=0,
            grid=(partials, spp),
            in_specs=[
                # flattened (L*K,) Gaussian coefficients (-0.5/alpha) in SMEM
                pl.BlockSpec(memory_space=pltpu.MemorySpace.SMEM),
                feat_spec,
            ],
            # output block indexed only by the partial -> resident accumulator
            # across the sequential layer-step axis, written back once.
            out_specs=pl.BlockSpec((None, two_bp, two_bp),
                                   lambda p, s: (p, 0, 0)),
        ),
        compiler_params=pltpu.CompilerParams(
            dimension_semantics=("parallel", "arbitrary"),
            vmem_limit_bytes=vmem_limit),
    )(coefs, features)
    return out


def jmmd_loss(features: jax.Array, alphas, index_matrix: jax.Array,
              batch_size: int, *, gram_dtype=jnp.bfloat16) -> jax.Array:
    """features: (L, 2B, D) per-layer [source; target] activations; alphas:
    (L, K) static Gaussian-kernel hyperparameters; index_matrix: (2B, 2B)."""
    alphas_np = np.asarray(alphas, dtype=np.float32)
    num_layers, two_b, d = features.shape
    num_kernels = alphas_np.shape[1]

    # 2^k alpha-ladder detection (ascending OR descending ordering) ->
    # single-exp + repeated-squaring path in the kernel.
    pow2_ladder = False
    if alphas_np.size and np.all(alphas_np > 0):
        if num_kernels == 1:
            pow2_ladder = True
        else:
            r = alphas_np[:, 1:] / alphas_np[:, :-1]
            if np.allclose(r, 2.0, rtol=1e-6):
                pow2_ladder = True
            elif np.allclose(r, 0.5, rtol=1e-6):
                pow2_ladder = True
                alphas_np = alphas_np[:, ::-1]       # kernel expects largest alpha last
    coefs = jnp.asarray((-0.5 / alphas_np).reshape(-1), dtype=jnp.float32)

    # Zero-pad the row axis to a layout-friendly size; padded rows are dropped
    # by the zero rows/cols of the padded index matrix.
    two_bp = _padded_rows(two_b)
    n_pad = two_bp - two_b
    feats = features
    idx = index_matrix.astype(jnp.float32)
    if n_pad:
        feats = jnp.pad(feats, ((0, 0), (0, n_pad), (0, 0)))
        idx = jnp.pad(idx, ((0, n_pad), (0, n_pad)))

    # bf16 HBM slab on the fast path: halves bytes moved + feature VMEM.
    slab_dtype = (jnp.bfloat16
                  if np.dtype(gram_dtype) == np.dtype(jnp.bfloat16)
                  else jnp.float32)
    feats = feats.astype(slab_dtype)

    partial_km = _jmmd_partial_products(
        feats, coefs, num_kernels=num_kernels, pow2_ladder=pow2_ladder,
        true_rows=two_b, gram_dtype=gram_dtype)

    km = partial_km[0]
    for pidx in range(1, partial_km.shape[0]):       # static, at most 2 partials
        km = km * partial_km[pidx]

    # Tiny contraction with the index matrix stays in the wrapper (keeps the
    # index matrix out of VMEM for the whole grid).
    return jnp.sum(km * idx) + 2.0 / float(batch_size - 1)


def jmmd_ref(features, alphas, index_matrix, batch_size):
    """Pure-JAX reference mirroring the PyTorch forward (f32 throughout)."""
    km = jnp.ones_like(index_matrix)
    for li in range(features.shape[0]):
        x = features[li]
        dist = jnp.sum((x[:, None, :] - x[None, :, :]) ** 2, axis=-1)
        mean_dist = jnp.mean(dist)
        lk = jnp.zeros_like(dist)
        for k in range(alphas.shape[1]):
            sigma_sq = alphas[li, k] * mean_dist
            lk = lk + jnp.exp(-dist / (2.0 * sigma_sq))
        km = km * lk
    return jnp.sum(km * index_matrix) + 2.0 / float(batch_size - 1)


if __name__ == "__main__":
    key = jax.random.PRNGKey(0)

    def make_features(k, batch, hidden, num_layers):
        ks = jax.random.split(k, 2 * num_layers)
        z_s = [jax.random.normal(ks[2 * l], (batch, hidden), jnp.float32)
               for l in range(num_layers)]
        z_t = [jax.random.normal(ks[2 * l + 1], (batch, hidden), jnp.float32)
               for l in range(num_layers)]
        return jnp.stack(
            [jnp.concatenate([zs, zt], axis=0) for zs, zt in zip(z_s, z_t)], 0)

    k1, k2, k3 = jax.random.split(key, 3)

    # case 1: tllib defaults — ascending 2^k alphas, linear index matrix,
    # exercises the pow2-ladder path, 2 partial products, bf16 + f32 paths.
    batch, hidden, L, K = 4, 32, 2, 5
    feats = make_features(k1, batch, hidden, L)
    alphas = np.asarray([[2.0 ** k for k in range(-3, -3 + K)]] * L, np.float32)
    idx = jnp.asarray(_update_index_matrix(batch, linear=True))
    ref = jax.block_until_ready(jmmd_ref(feats, jnp.asarray(alphas), idx, batch))
    loss_f32 = jax.block_until_ready(
        jmmd_loss(feats, alphas, idx, batch, gram_dtype=jnp.float32))
    np.testing.assert_allclose(np.asarray(loss_f32), np.asarray(ref),
                               rtol=1e-4, atol=1e-4)
    loss_bf16 = jax.block_until_ready(
        jmmd_loss(feats, alphas, idx, batch, gram_dtype=jnp.bfloat16))
    np.testing.assert_allclose(np.asarray(loss_bf16), np.asarray(ref),
                               rtol=1e-1, atol=1e-1)

    # case 2: odd batch (row padding + bandwidth-mean correction), descending
    # 2^-k alphas (ladder flip), quadratic (non-linear) index matrix, 3 steps.
    batch2, hidden2, L2 = 5, 48, 3
    feats2 = make_features(k2, batch2, hidden2, L2)
    alphas2 = np.asarray([[4.0, 2.0, 1.0]] * L2, np.float32)
    idx2 = jnp.asarray(_update_index_matrix(batch2, linear=False))
    ref2 = jax.block_until_ready(
        jmmd_ref(feats2, jnp.asarray(alphas2), idx2, batch2))
    loss2 = jax.block_until_ready(
        jmmd_loss(feats2, alphas2, idx2, batch2, gram_dtype=jnp.float32))
    np.testing.assert_allclose(np.asarray(loss2), np.asarray(ref2),
                               rtol=1e-4, atol=1e-4)

    # case 3: non-ladder alphas -> general per-kernel path.
    batch3, hidden3, L3 = 4, 32, 2
    feats3 = make_features(k3, batch3, hidden3, L3)
    alphas3 = np.asarray([[0.7, 1.3, 2.9]] * L3, np.float32)
    idx3 = jnp.asarray(_update_index_matrix(batch3, linear=True))
    ref3 = jax.block_until_ready(
        jmmd_ref(feats3, jnp.asarray(alphas3), idx3, batch3))
    loss3 = jax.block_until_ready(
        jmmd_loss(feats3, alphas3, idx3, batch3, gram_dtype=jnp.float32))
    np.testing.assert_allclose(np.asarray(loss3), np.asarray(ref3),
                               rtol=1e-4, atol=1e-4)

    print("KERNEL_OK")
</pallas_src>

<mosaic_0001>
module attributes {stable_mosaic.version = 11 : i64} {
  func.func @_jmmd_kernel(%arg0: i32, %arg1: i32, %arg2: memref<10xf32, #tpu.memory_space<smem>>, %arg3: memref<1x8x32xf32, #tpu.memory_space<vmem>>, %arg4: memref<1x8x8xf32, #tpu.memory_space<vmem>>) attributes {dimension_semantics = [#tpu.dimension_semantics<parallel>, #tpu.dimension_semantics<arbitrary>], iteration_bounds = array<i64: 2, 1>, scalar_prefetch = 0 : i64, scratch_operands = 0 : i64, tpu.core_type = #tpu.core_type<tc>, window_params = [{transform_indices = @transform_0, window_bounds = array<i64: 10>}, {transform_indices = @transform_1, window_bounds = array<i64: 1, 8, 32>}, {transform_indices = @transform_2, window_bounds = array<i64: 1, 8, 8>}]} {
    %c1_i32 = arith.constant 1 : i32
    %0 = arith.muli %arg0, %c1_i32 : i32
    %1 = arith.addi %0, %arg1 : i32
    %c1_i32_0 = arith.constant 1 : i32
    %2 = arith.muli %1, %c1_i32_0 : i32
    %c0 = arith.constant 0 : index
    %c0_1 = arith.constant 0 : index
    %c0_2 = arith.constant 0 : index
    %3 = vector.load %arg3[%c0, %c0_1, %c0_2] : memref<1x8x32xf32, #tpu.memory_space<vmem>>, vector<1x8x32xf32>
    %4 = vector.shape_cast %3 : vector<1x8x32xf32> to vector<8x32xf32>
    %cst = arith.constant dense<0.000000e+00> : vector<32xf32>
    %5 = vector.multi_reduction <add>, %4, %cst [0] : vector<8x32xf32> to vector<32xf32>
    %6 = vector.shape_cast %5 : vector<32xf32> to vector<1x32xf32>
    %cst_3 = arith.constant 1.250000e-01 : f32
    %7 = vector.broadcast %cst_3 : f32 to vector<1x32xf32>
    %8 = arith.mulf %6, %7 : vector<1x32xf32>
    %9 = vector.broadcast %8 : vector<1x32xf32> to vector<8x32xf32>
    %10 = arith.subf %4, %9 : vector<8x32xf32>
    %cst_4 = arith.constant dense<0.000000e+00> : vector<8x8xf32>
    %11 = tpu.matmul %10, %10, %cst_4 {dimension_numbers = #tpu.dot_dimension_numbers<[1], [1], [0], [0], [0, 0, 1, 0], [], []>} : vector<8x32xf32>, vector<8x32xf32>, vector<8x8xf32> -> vector<8x8xf32>
    %12 = arith.mulf %10, %10 : vector<8x32xf32>
    %cst_5 = arith.constant dense<0.000000e+00> : vector<8xf32>
    %13 = vector.multi_reduction <add>, %12, %cst_5 [1] : vector<8x32xf32> to vector<8xf32>
    %14 = vector.shape_cast %13 : vector<8xf32> to vector<8x1xf32>
    %15 = tpu.transpose %14, [1, 0] : vector<8x1xf32> -> vector<1x8xf32>
    %16 = vector.broadcast %14 : vector<8x1xf32> to vector<8x8xf32>
    %17 = vector.broadcast %15 : vector<1x8xf32> to vector<8x8xf32>
    %18 = arith.addf %16, %17 : vector<8x8xf32>
    %cst_6 = arith.constant 2.000000e+00 : f32
    %19 = vector.broadcast %cst_6 : f32 to vector<8x8xf32>
    %20 = arith.mulf %19, %11 : vector<8x8xf32>
    %21 = arith.subf %18, %20 : vector<8x8xf32>
    %cst_7 = arith.constant 0.000000e+00 : f32
    %22 = vector.broadcast %cst_7 : f32 to vector<8x8xf32>
    %23 = arith.maximumf %21, %22 : vector<8x8xf32>
    %24 = vector.shape_cast %14 : vector<8x1xf32> to vector<1x8x1xf32>
    %cst_8 = arith.constant dense<0.000000e+00> : vector<1xf32>
    %25 = vector.multi_reduction <add>, %24, %cst_8 [1, 2] : vector<1x8x1xf32> to vector<1xf32>
    %26 = vector.shape_cast %25 : vector<1xf32> to vector<1x1x1xf32>
    %27 = vector.extract %26[0, 0, 0] : f32 from vector<1x1x1xf32>
    %cst_9 = arith.constant 1.250000e-01 : f32
    %28 = arith.mulf %27, %cst_9 : f32
    %cst_10 = arith.constant 0.000000e+00 : f32
    %29 = arith.maximumf %28, %cst_10 : f32
    %cst_11 = arith.constant 2.000000e+00 : f32
    %30 = arith.mulf %cst_11, %29 : f32
    %cst_12 = arith.constant 9.99999996E-13 : f32
    %31 = arith.addf %30, %cst_12 : f32
    %cst_13 = arith.constant 1.000000e+00 : f32
    %32 = arith.divf %cst_13, %31 : f32
    %c0_i32 = arith.constant 0 : i32
    %33 = arith.addi %2, %c0_i32 : i32
    %c5_i32 = arith.constant 5 : i32
    %34 = arith.muli %33, %c5_i32 : i32
    %c5_i32_14 = arith.constant 5 : i32
    %35 = arith.addi %34, %c5_i32_14 : i32
    %c1_i32_15 = arith.constant 1 : i32
    %36 = arith.subi %35, %c1_i32_15 : i32
    %37 = arith.index_cast %36 : i32 to index
    %38 = memref.load %arg2[%37] : memref<10xf32, #tpu.memory_space<smem>>
    %39 = arith.mulf %38, %32 : f32
    %40 = vector.broadcast %39 : f32 to vector<8x8xf32>
    %41 = arith.mulf %23, %40 : vector<8x8xf32>
    %42 = math.exp %41 : vector<8x8xf32>
    %43 = arith.mulf %42, %42 : vector<8x8xf32>
    %44 = arith.addf %42, %43 : vector<8x8xf32>
    %45 = arith.mulf %43, %43 : vector<8x8xf32>
    %46 = arith.addf %44, %45 : vector<8x8xf32>
    %47 = arith.mulf %45, %45 : vector<8x8xf32>
    %48 = arith.addf %46, %47 : vector<8x8xf32>
    %49 = arith.mulf %47, %47 : vector<8x8xf32>
    %50 = arith.addf %48, %49 : vector<8x8xf32>
    %c0_i32_16 = arith.constant 0 : i32
    %51 = arith.cmpi eq, %arg1, %c0_i32_16 : i32
    %52 = arith.extui %51 : i1 to i32
    %c0_i32_17 = arith.constant 0 : i32
    %53 = arith.cmpi ne, %52, %c0_i32_17 : i32
    scf.if %53 {
      %c0_20 = arith.constant 0 : index
      %c0_21 = arith.constant 0 : index
      %c0_22 = arith.constant 0 : index
      %57 = vector.load %arg4[%c0_20, %c0_21, %c0_22] : memref<1x8x8xf32, #tpu.memory_space<vmem>>, vector<1x8x8xf32>
      %58 = vector.shape_cast %57 : vector<1x8x8xf32> to vector<8x8xf32>
      %59 = vector.shape_cast %50 : vector<8x8xf32> to vector<1x8x8xf32>
      tpu.vector_store %arg4[%c0_20, %c0_21, %c0_22], %59 {strides = array<i32>} : memref<1x8x8xf32, #tpu.memory_space<vmem>>, vector<1x8x8xf32>,
    } else {
    }
    %c0_i32_18 = arith.constant 0 : i32
    %54 = arith.cmpi sgt, %arg1, %c0_i32_18 : i32
    %55 = arith.extui %54 : i1 to i32
    %c0_i32_19 = arith.constant 0 : i32
    %56 = arith.cmpi ne, %55, %c0_i32_19 : i32
    scf.if %56 {
      %c0_20 = arith.constant 0 : index
      %c0_21 = arith.constant 0 : index
      %c0_22 = arith.constant 0 : index
      %57 = vector.load %arg4[%c0_20, %c0_21, %c0_22] : memref<1x8x8xf32, #tpu.memory_space<vmem>>, vector<1x8x8xf32>
      %58 = vector.shape_cast %57 : vector<1x8x8xf32> to vector<8x8xf32>
      %59 = arith.mulf %58, %50 : vector<8x8xf32>
      %c0_23 = arith.constant 0 : index
      %c0_24 = arith.constant 0 : index
      %c0_25 = arith.constant 0 : index
      %60 = vector.load %arg4[%c0_23, %c0_24, %c0_25] : memref<1x8x8xf32, #tpu.memory_space<vmem>>, vector<1x8x8xf32>
      %61 = vector.shape_cast %60 : vector<1x8x8xf32> to vector<8x8xf32>
      %62 = vector.shape_cast %59 : vector<8x8xf32> to vector<1x8x8xf32>
      tpu.vector_store %arg4[%c0_23, %c0_24, %c0_25], %62 {strides = array<i32>} : memref<1x8x8xf32, #tpu.memory_space<vmem>>, vector<1x8x8xf32>,
    } else {
    }
    return
  }
  func.func @transform_0(%arg0: i32, %arg1: i32) -> i32 {
    %c0_i32 = arith.constant 0 : i32
    %c0_i32_0 = arith.constant 0 : i32
    return %c0_i32 : i32
  }
  func.func @transform_1(%arg0: i32, %arg1: i32) -> (i32, i32, i32) {
    %c1_i32 = arith.constant 1 : i32
    %0 = arith.muli %arg0, %c1_i32 : i32
    %1 = arith.addi %0, %arg1 : i32
    %c0_i32 = arith.constant 0 : i32
    %c0_i32_0 = arith.constant 0 : i32
    %c0_i32_1 = arith.constant 0 : i32
    return %1, %c0_i32, %c0_i32_0 : i32, i32, i32
  }
  func.func @transform_2(%arg0: i32, %arg1: i32) -> (i32, i32, i32) {
    %c0_i32 = arith.constant 0 : i32
    %c0_i32_0 = arith.constant 0 : i32
    %c0_i32_1 = arith.constant 0 : i32
    return %arg0, %c0_i32, %c0_i32_0 : i32, i32, i32
  }
}

</mosaic_0001>

<llo_original>
// kernel: tpu_custom_call.1
$region0: #{tpu_custom_call.1}
  #allocation0 [shape = 'u32[]', space=smem, size = 0x4, offset = 0x4, fixed_abs, tag = 'smem constant byte address 0x4 - core index']
  #allocation1 [shape = 'u32[144,128]{1,0:T(1,128)}', space=vmem, size = 0x12000, scoped, tag = 'internal scratch']
  %s0 = inlined_call_operand.hbm [shape: f32[10], index: 0, kind: input, shape index: {}]
  %s1 = inlined_call_operand.hbm [shape: f32[2,8,32], index: 1, kind: input, shape index: {}]
  %s2 = inlined_call_operand.hbm [shape: f32[2,8,8], index: 2, kind: output, shape index: {}]
  %s3 = sld [smem:[#allocation0]]
  $region57: #{tpu_custom_call.1} parent=0
    _
  %s5 = ssub.s32 1, %s3
  %s6 = scalar_select 0, %s5, %s3
  $region1: #{tpu_custom_call.1} parent=0
    #allocation2 [shape = 'u8[512]{0}', space=smem, size = 0x200, scoped, tag = 'input window, operand 0, single buffered']
    #allocation3 [shape = 's32[2]{0}', space=sflag, size = 0x8, scoped, tag = 'scoped memory for tpu_custom_call.1']
    #allocation4 [shape = 's32[2]{0}', space=sflag, size = 0x8, scoped, tag = 'scoped memory for tpu_custom_call.1']
    #allocation5 [shape = 's32[2]{0}', space=sflag, size = 0x8, scoped, tag = 'scoped memory for tpu_custom_call.1']
    #allocation6 [shape = 'u8[8192]{0}', space=vmem, size = 0x2000, scoped, tag = 'input window, operand 1']
    #allocation7 [shape = 'u8[8192]{0}', space=vmem, size = 0x2000, scoped, tag = 'output window, operand 0']
    %7 = vsyncpa [#allocation5], 0
    %8 = vsyncpa [#allocation3], 0
    %s9 = scalar_lea.sflag [#allocation3], 1
    %10 = vsyncpa %s9, 0
    %11 = vsyncpa [#allocation4], 0
    %s12 = scalar_lea.sflag [#allocation4], 1
    %13 = vsyncpa %s12, 0
    loop: start=0, step=1, limit=4
    $region2: #{tpu_custom_call.1} parent=1 // loop_pre_header
      _
    $region3: #{tpu_custom_call.1} parent=1 // loop_header
      %s15 = sphi 0, %s19
      %p16 = scmp.ge.s32.totalorder %s15, 4
      %s22 = sphi 0, %s34
      %s23 = sphi 0, %s30
      %s24 = sphi 0, %s22
      %s25 = sphi 0, %s23
      %s26 = sphi 0, %s24
      %s27 = sphi 0, %s25
      %s35 = sphi 0, %s35
      %s37 = sphi 0, %s35
      %s38 = sphi 0, %s37
      %s52 = sphi 0, %s38
      %s60 = sphi 0, %s62
      %s63 = sphi 0, %s60
      %s64 = sphi 0, %s63
      %s80 = sphi 0, %s64
      %s86 = sphi 0, %s88
      %s89 = sphi 0, %s86
      %s90 = sphi 0, %s89
      %s106 = sphi 0, %s90
    $region4: #{tpu_custom_call.1} parent=1 // loop_header_branch
      %18 = sbr.rel (%p16) target = $region8
    $region5: #{tpu_custom_call.1} parent=1 // loop_body
      %s20 = ssub.s32 %s15, 1
      %s21 = ssub.s32 %s15, 2
      %s28 = sadd.s32 1, %s23
      %p29 = scmp.ge.s32.totalorder %s28, 1
      %s30 = scalar_select %p29, 0, %s28
      %s31 = sadd.s32 1, %s22
      %s32 = scalar_select %p29, %s31, %s22
      %p33 = scmp.ge.s32.totalorder %s32, 2
      %s34 = scalar_select %p33, 0, %s32
      %s36 = sadd.s32 %s35, 1
      %p39 = scmp.eq.s32.totalorder %s15, 1
      %p40 = scmp.ne.s32.totalorder %s35, %s37
      %p41 = scmp.eq.s32.totalorder %s15, 0
      %p42 = por %p40, %p41
      %p43 = scmp.ne.s32.totalorder %s35, %s37
      %p44 = scmp.eq.s32.totalorder %s20, 1
      %p45 = por %p43, %p44
      %p46 = scmp.ne.s32.totalorder %s37, %s38
      %p47 = scmp.eq.s32.totalorder %s20, 0
      %p48 = por %p46, %p47
      %p49 = scmp.ne.s32.totalorder %s37, %s38
      %p50 = scmp.eq.s32.totalorder %s21, 1
      %p51 = por %p49, %p50
      %p53 = scmp.ne.s32.totalorder %s38, %s52
      %p54 = scmp.eq.s32.totalorder %s21, 0
      %p55 = por %p53, %p54
      %s56 = sadd.s32 %s22, %s23
      %s57 = sadd.s32 %s34, %s30
      %s58 = ssub.s32 %s56, %s57
      %p59 = scmp.eq.s32.totalorder %s58, 0
      %s61 = sadd.s32 %s60, 1
      %s62 = scalar_select %p59, %s60, %s61
      %p65 = pneg %p59
      %p66 = scmp.eq.s32.totalorder %s15, 1
      %p67 = por %p65, %p66
      %p68 = scmp.ne.s32.totalorder %s60, %s63
      %p69 = scmp.eq.s32.totalorder %s15, 0
      %p70 = por %p68, %p69
      %p71 = scmp.ne.s32.totalorder %s60, %s63
      %p72 = scmp.eq.s32.totalorder %s20, 1
      %p73 = por %p71, %p72
      %p74 = scmp.ne.s32.totalorder %s63, %s64
      %p75 = scmp.eq.s32.totalorder %s20, 0
      %p76 = por %p74, %p75
      %p77 = scmp.ne.s32.totalorder %s63, %s64
      %p78 = scmp.eq.s32.totalorder %s21, 1
      %p79 = por %p77, %p78
      %p81 = scmp.ne.s32.totalorder %s64, %s80
      %p82 = scmp.eq.s32.totalorder %s21, 0
      %p83 = por %p81, %p82
      %s84 = ssub.s32 %s22, %s34
      %p85 = scmp.eq.s32.totalorder %s84, 0
      %s87 = sadd.s32 %s86, 1
      %s88 = scalar_select %p85, %s86, %s87
      %p91 = pneg %p85
      %p92 = scmp.eq.s32.totalorder %s15, 1
      %p93 = por %p91, %p92
      %p94 = scmp.ne.s32.totalorder %s86, %s89
      %p95 = scmp.eq.s32.totalorder %s15, 0
      %p96 = por %p94, %p95
      %p97 = scmp.ne.s32.totalorder %s86, %s89
      %p98 = scmp.eq.s32.totalorder %s20, 1
      %p99 = por %p97, %p98
      %p100 = scmp.ne.s32.totalorder %s89, %s90
      %p101 = scmp.eq.s32.totalorder %s20, 0
      %p102 = por %p100, %p101
      %p103 = scmp.ne.s32.totalorder %s89, %s90
      %p104 = scmp.eq.s32.totalorder %s21, 1
      %p105 = por %p103, %p104
      %p107 = scmp.ne.s32.totalorder %s90, %s106
      %p108 = scmp.eq.s32.totalorder %s21, 0
      %p109 = por %p107, %p108
      %p110 = scmp.le.s32.totalorder 1, %s15
      %p111 = scmp.lt.s32.totalorder %s15, 3
      %p112 = pnand %p110, %p111
      %p113 = pneg %p112
      // Predicated region
      $region9: #{tpu_custom_call.1} parent=5 // pred_check
        _
      $region10: #{tpu_custom_call.1} parent=5 // pred_check_branch
        %115 = sbr.rel (%p112) target = $region12
      $region11: #{tpu_custom_call.1} parent=5 // pred_region
        %s116 = ssub.s32 %s15, 1
        // Predicated region
        $region13: #{tpu_custom_call.1} parent=11 // pred_check
          %p117 = pneg %p48
        $region14: #{tpu_custom_call.1} parent=11 // pred_check_branch
          %119 = sbr.rel (%p117) target = $region16
        $region15: #{tpu_custom_call.1} parent=11 // pred_region
          %s121 = ssub.s32 16, 16
          %122 = vsyncadd [#allocation5], %s121
          %125 = dma.hbm_to_smem %s0, 16, [#allocation2], [#allocation5]
        $region16: #{tpu_custom_call.1} parent=11 // pred_fallthru
          _
      $region12: #{tpu_custom_call.1} parent=5 // pred_fallthru
        _
      %p126 = scmp.lt.s32.totalorder %s15, 2
      // Predicated region
      $region17: #{tpu_custom_call.1} parent=5 // pred_check
        %p127 = pneg %p126
      $region18: #{tpu_custom_call.1} parent=5 // pred_check_branch
        %129 = sbr.rel (%p127) target = $region20
      $region19: #{tpu_custom_call.1} parent=5 // pred_region
        // Predicated region
        $region21: #{tpu_custom_call.1} parent=19 // pred_check
          %p130 = pneg %p70
        $region22: #{tpu_custom_call.1} parent=19 // pred_check_branch
          %132 = sbr.rel (%p130) target = $region24
        $region23: #{tpu_custom_call.1} parent=19 // pred_region
          %s133 = sand.u32 %s60, 1
          %s134 = scalar_lea.sflag [#allocation3], %s133
          %s135 = sand.u32 %s60, 1
          %s136 = smul.addr %s135, 8
          %s137 = scalar_lea.vmem [#allocation6], %s136
          %s138 = sadd.s32 %s22, %s23
          %s140 = ssub.s32 128, 128
          %141 = vsyncadd %s134, %s140
          %s142 = smul.addr %s138, 128
          %s143 = scalar_lea.hbm %s1, %s142
          %s145 = sshll.u32 %s137, 4
          %s146 = int_to_ptr.vmem [resolvable:$true] %s145
          %148 = dma.hbm_to_vmem [thread:$0]  %s143, 128, %s146, %s134
        $region24: #{tpu_custom_call.1} parent=19 // pred_fallthru
          _
      $region20: #{tpu_custom_call.1} parent=5 // pred_fallthru
        _
      %p149 = scmp.le.s32.totalorder 1, %s15
      %p150 = scmp.lt.s32.totalorder %s15, 3
      %p151 = pnand %p149, %p150
      %p152 = pneg %p151
      // Predicated region
      $region25: #{tpu_custom_call.1} parent=5 // pred_check
        _
      $region26: #{tpu_custom_call.1} parent=5 // pred_check_branch
        %154 = sbr.rel (%p151) target = $region28
      $region27: #{tpu_custom_call.1} parent=5 // pred_region
        %s155 = ssub.s32 %s15, 1
        // Predicated region
        $region29: #{tpu_custom_call.1} parent=27 // pred_check
          %p156 = pneg %p48
        $region30: #{tpu_custom_call.1} parent=27 // pred_check_branch
          %158 = sbr.rel (%p156) target = $region32
        $region31: #{tpu_custom_call.1} parent=27 // pred_region
          %159 = dma.done [#allocation5], 16
        $region32: #{tpu_custom_call.1} parent=27 // pred_fallthru
          _
        %s160 = sand.u32 %s63, 1
        %s161 = scalar_lea.sflag [#allocation3], %s160
        %s162 = sand.u32 %s63, 1
        %s163 = smul.addr %s162, 8
        %s164 = scalar_lea.vmem [#allocation6], %s163
        // Predicated region
        $region33: #{tpu_custom_call.1} parent=27 // pred_check
          %p165 = pneg %p76
        $region34: #{tpu_custom_call.1} parent=27 // pred_check_branch
          %167 = sbr.rel (%p165) target = $region36
        $region35: #{tpu_custom_call.1} parent=27 // pred_region
          %168 = dma.done %s161, 128
        $region36: #{tpu_custom_call.1} parent=27 // pred_fallthru
          _
        %169 = sfence
        %p170 = pneg %p48
        %p171 = pneg %p45
        %s172 = sand.u32 %s63, 1
        %s173 = scalar_lea.sflag [#allocation3], %s172
        %s174 = sand.u32 %s63, 1
        %s175 = smul.addr %s174, 8
        %s176 = scalar_lea.vmem [#allocation6], %s175
        %p177 = pneg %p76
        %p178 = pneg %p73
        %p179 = pneg %p102
        %p180 = pneg %p99
        %s181 = sand.u32 %s89, 1
        %s182 = scalar_lea.sflag [#allocation4], %s181
        %s183 = sand.u32 %s89, 1
        %s184 = smul.addr %s183, 8
        %s185 = scalar_lea.vmem [#allocation7], %s184
        %s186 = sadd.s32 %s24, %s25
        %s187 = sadd.s32 %s24, %s25
        %v188 = vld [vmem:[%s164] sm:$0xff]
        %vm189 = vcmask 261120
        %v190 = vsel %vm189, %v188, 0.0
        %v191 = vrot.slane %v190, 4
        %v192 = vadd.f32 %v190, %v191
        %v193 = vrot.slane %v192, 2
        %v194 = vadd.f32 %v192, %v193
        %v195 = vrot.slane %v194, 1
        %v196 = vadd.f32 %v194, %v195
        %v197 = vmul.f32 %v196, 0.125
        %v198 = vsub.f32 %v188, %v197
        %v200 = vsel %vm189, %v198, 0
        %202 = vmatprep.subr.mxu0 0.0
        %203 = vmatpush1.xpose.msra.mxu0 %v200
        %204 = vmatprep.subr.mxu0 0.0
        %205 = vmatpush1.xpose.msra.mxu0 0.0
        %206 = vmatprep.subr.mxu0 0.0
        %207 = vmatpush1.xpose.msra.mxu0 0.0
        %208 = vmatprep.subr.mxu0 0.0
        %209 = vmatpush1.xpose.msra.mxu0 0.0
        %210 = vmatprep.subr.mxu0 0.0
        %211 = vmatpush1.xpose.msra.mxu0 0.0
        %212 = vmatprep.subr.mxu0 0.0
        %213 = vmatpush1.xpose.msra.mxu0 0.0
        %214 = vmatprep.subr.mxu0 0.0
        %215 = vmatpush1.xpose.msra.mxu0 0.0
        %216 = vmatprep.subr.mxu0 0.0
        %217 = vmatpush1.xpose.msra.mxu0 0.0
        %218 = vmatprep.subr.mxu0 0.0
        %219 = vmatpush1.xpose.msra.mxu0 0.0
        %220 = vmatprep.subr.mxu0 0.0
        %221 = vmatpush1.xpose.msra.mxu0 0.0
        %222 = vmatprep.subr.mxu0 0.0
        %223 = vmatpush1.xpose.msra.mxu0 0.0
        %224 = vmatprep.subr.mxu0 0.0
        %225 = vmatpush1.xpose.msra.mxu0 0.0
        %226 = vmatprep.subr.mxu0 0.0
        %227 = vmatpush1.xpose.msra.mxu0 0.0
        %228 = vmatprep.subr.mxu0 0.0
        %229 = vmatpush1.xpose.msra.mxu0 0.0
        %230 = vmatprep.subr.mxu0 0.0
        %231 = vmatpush1.xpose.msra.mxu0 0.0
        %232 = vmatprep.subr.mxu0 0.0
        %233 = vmatpush1.xpose.msra.mxu0 0.0
        %234 = vmatprep.subr.mxu0 0.0
        %235 = vmatpush1.xpose.msra.mxu0 0.0
        %236 = vmatprep.subr.mxu0 0.0
        %237 = vmatpush1.xpose.msra.mxu0 0.0
        %238 = vmatprep.subr.mxu0 0.0
        %239 = vmatpush1.xpose.msra.mxu0 0.0
        %240 = vmatprep.subr.mxu0 0.0
        %241 = vmatpush1.xpose.msra.mxu0 0.0
        %242 = vmatprep.subr.mxu0 0.0
        %243 = vmatpush1.xpose.msra.mxu0 0.0
        %244 = vmatprep.subr.mxu0 0.0
        %245 = vmatpush1.xpose.msra.mxu0 0.0
        %246 = vmatprep.subr.mxu0 0.0
        %247 = vmatpush1.xpose.msra.mxu0 0.0
        %248 = vmatprep.subr.mxu0 0.0
        %249 = vmatpush1.xpose.msra.mxu0 0.0
        %250 = vmatprep.subr.mxu0 0.0
        %251 = vmatpush1.xpose.msra.mxu0 0.0
        %252 = vmatprep.subr.mxu0 0.0
        %253 = vmatpush1.xpose.msra.mxu0 0.0
        %254 = vmatprep.subr.mxu0 0.0
        %255 = vmatpush1.xpose.msra.mxu0 0.0
        %256 = vmatprep.subr.mxu0 0.0
        %257 = vmatpush1.xpose.msra.mxu0 0.0
        %258 = vmatprep.subr.mxu0 0.0
        %259 = vmatpush1.xpose.msra.mxu0 0.0
        %260 = vmatprep.subr.mxu0 0.0
        %261 = vmatpush1.xpose.msra.mxu0 0.0
        %262 = vmatprep.subr.mxu0 0.0
        %263 = vmatpush1.xpose.msra.mxu0 0.0
        %264 = vmatprep.subr.mxu0 0.0
        %265 = vmatpush1.xpose.msra.mxu0 0.0
        %266 = vmatprep.mubr.f32.mxu0 0.0
        %267 = vmatmul.mubr.f32.gmra.mrb[0].mxu0 %v200
        %v268 = vpop.f32.mrb[0].mxu0
        %v269 = vadd.f32 0.0, %v268
        %v270 = vpop.f32.mrb[0].mxu0
        %271 = vdwg.mxu0
        %v272 = vmul.f32 %v198, %v198
        %v273 = vsel %vm189, %v272, 0.0
        %274 = vadd.xlane.f32.xlu0 %v273
        %v275 = vpop.xlane.xlu0 %274
        %276 = vxpose.xlu0.b32.start [1/16] %v275, 128
        %277 = vxpose.xlu0.b32.cont [2/16] 0.0, 128
        %278 = vxpose.xlu0.b32.cont [3/16] 0.0, 128
        %279 = vxpose.xlu0.b32.cont [4/16] 0.0, 128
        %280 = vxpose.xlu0.b32.cont [5/16] 0.0, 128
        %281 = vxpose.xlu0.b32.cont [6/16] 0.0, 128
        %282 = vxpose.xlu0.b32.cont [7/16] 0.0, 128
        %283 = vxpose.xlu0.b32.cont [8/16] 0.0, 128
        %284 = vxpose.xlu0.b32.cont [9/16] 0.0, 128
        %285 = vxpose.xlu0.b32.cont [10/16] 0.0, 128
        %286 = vxpose.xlu0.b32.cont [11/16] 0.0, 128
        %287 = vxpose.xlu0.b32.cont [12/16] 0.0, 128
        %288 = vxpose.xlu0.b32.cont [13/16] 0.0, 128
        %289 = vxpose.xlu0.b32.cont [14/16] 0.0, 128
        %290 = vxpose.xlu0.b32.cont [15/16] 0.0, 128
        %291 = vxpose.xlu0.b32.end [16/16] 0.0, 128
        %v292 = vpop.trf.xlu0
        %v293 = vpop.trf.xlu0
        %v294 = vpop.trf.xlu0
        %v295 = vpop.trf.xlu0
        %v296 = vpop.trf.xlu0
        %v297 = vpop.trf.xlu0
        %v298 = vpop.trf.xlu0
        %v299 = vpop.trf.xlu0
        %v300 = vpop.trf.xlu0
        %v301 = vpop.trf.xlu0
        %v302 = vpop.trf.xlu0
        %v303 = vpop.trf.xlu0
        %v304 = vpop.trf.xlu0
        %v305 = vpop.trf.xlu0
        %v306 = vpop.trf.xlu0
        %v307 = vpop.trf.xlu0
        %v308 = vlaneseq
        %v309 = vshrl.u32 %v308, 7
        %v310 = vsub.s32 0, %v309
        %v311 = vrot.slane %v292, %v310
        %v312 = vadd.f32 %v275, %v311
        %v313 = vmul.f32 %v269, 2.0
        %v314 = vsub.f32 %v312, %v313
        %v315 = vmax.f32 %v314, 0.0
        %vm316 = vcmask 7168
        %v317 = vsel %vm316, %v275, 0.0
        %318 = vadd.xlane.f32.xlu0 %v317
        %v319 = vpop.xlane.xlu0 %318
        %v320 = vrot.slane %v319, 4
        %v321 = vadd.f32 %v319, %v320
        %v322 = vrot.slane %v321, 2
        %v323 = vadd.f32 %v321, %v322
        %v324 = vrot.slane %v323, 1
        %v325 = vadd.f32 %v323, %v324
        %s326 = vtos %v325
        %s327 = smul.f32 %s326, 0.125
        %s328 = smax.f32 %s327, 0.0
        %s329 = smul.f32 %s328, 2.0
        %s330 = sadd.f32 %s329, 1e-12
        %v331 = vstv %s330
        %v332 = vrcp.pop %v331
        %s333 = vtos %v332
        %s334 = smul.u32 %s187, 5
        %s335 = sadd.s32 %s334, 4
        %s336 = sld [smem:[#allocation2 + %s335]]
        %s337 = smul.f32 %s336, %s333
        %v338 = vstv %s337
        %v339 = vmul.f32 %v315, %v338
        %v340 = vmul.f32 %v339, 1.442695
        %v341 = vpow.pop %v340
        %v342 = vmul.f32 %v341, %v341
        %v343 = vadd.f32 %v341, %v342
        %v344 = vmul.f32 %v342, %v342
        %v345 = vadd.f32 %v343, %v344
        %v346 = vmul.f32 %v344, %v344
        %v347 = vadd.f32 %v345, %v346
        %v348 = vmul.f32 %v346, %v346
        %v349 = vadd.f32 %v347, %v348
        %p350 = scmp.eq.s32.totalorder %s25, 0
        // Predicated region
        $region37: #{tpu_custom_call.1} parent=27 // pred_check
          %p351 = pneg %p350
        $region38: #{tpu_custom_call.1} parent=27 // pred_check_branch
          %353 = sbr.rel (%p351) target = $region40
        $region39: #{tpu_custom_call.1} parent=27 // pred_region
          %vm354 = vcmask 64512
          %355 = vst.msk [vmem:[%s185] sm:$0xff] %vm354, %v349
        $region40: #{tpu_custom_call.1} parent=27 // pred_fallthru
          _
        %p356 = scmp.gt.s32.totalorder %s25, 0
        // Predicated region
        $region41: #{tpu_custom_call.1} parent=27 // pred_check
          %p357 = pneg %p356
        $region42: #{tpu_custom_call.1} parent=27 // pred_check_branch
          %359 = sbr.rel (%p357) target = $region44
        $region43: #{tpu_custom_call.1} parent=27 // pred_region
          %v360 = vld [vmem:[%s185] sm:$0xff]
          %v361 = vmul.f32 %v360, %v349
          %vm362 = vcmask 64512
          %363 = vst.msk [vmem:[%s185] sm:$0xff] %vm362, %v361
        $region44: #{tpu_custom_call.1} parent=27 // pred_fallthru
          _
        %s364 = sand.u32 %s89, 1
        %s365 = scalar_lea.sflag [#allocation4], %s364
        %s366 = sand.u32 %s89, 1
        %s367 = smul.addr %s366, 8
        %s368 = scalar_lea.vmem [#allocation7], %s367
        // Predicated region
        $region45: #{tpu_custom_call.1} parent=27 // pred_check
          %p369 = pneg %p99
        $region46: #{tpu_custom_call.1} parent=27 // pred_check_branch
          %371 = sbr.rel (%p369) target = $region48
        $region47: #{tpu_custom_call.1} parent=27 // pred_region
          %s373 = ssub.s32 128, 128
          %374 = vsyncadd %s365, %s373
          %s375 = smul.addr %s24, 128
          %s376 = scalar_lea.hbm %s2, %s375
          %s378 = sshll.u32 %s368, 4
          %s379 = int_to_ptr.vmem [resolvable:$true] %s378
          %381 = dma.vmem_to_hbm [thread:$0]  %s379, 128, %s376, %s365
        $region48: #{tpu_custom_call.1} parent=27 // pred_fallthru
          _
      $region28: #{tpu_custom_call.1} parent=5 // pred_fallthru
        _
      %p382 = scmp.le.s32.totalorder 2, %s15
      // Predicated region
      $region49: #{tpu_custom_call.1} parent=5 // pred_check
        %p383 = pneg %p382
      $region50: #{tpu_custom_call.1} parent=5 // pred_check_branch
        %385 = sbr.rel (%p383) target = $region52
      $region51: #{tpu_custom_call.1} parent=5 // pred_region
        %s386 = ssub.s32 %s15, 2
        // Predicated region
        $region53: #{tpu_custom_call.1} parent=51 // pred_check
          %p387 = pneg %p105
        $region54: #{tpu_custom_call.1} parent=51 // pred_check_branch
          %389 = sbr.rel (%p387) target = $region56
        $region55: #{tpu_custom_call.1} parent=51 // pred_region
          %s390 = sand.u32 %s90, 1
          %s391 = scalar_lea.sflag [#allocation4], %s390
          %s392 = sand.u32 %s90, 1
          %s393 = smul.addr %s392, 8
          %s394 = scalar_lea.vmem [#allocation7], %s393
          %395 = dma.done %s391, 128
        $region56: #{tpu_custom_call.1} parent=51 // pred_fallthru
          _
      $region52: #{tpu_custom_call.1} parent=5 // pred_fallthru
        _
    $region6: #{tpu_custom_call.1} parent=1 // loop_footer
      %s19 = sadd.s32 1, %s15
    $region7: #{tpu_custom_call.1} parent=1 // loop_footer_branch
      %14 = sbr.rel target = $region3
    $region8: #{tpu_custom_call.1} parent=1 // loop_exit
      _
    %396 = vsyncpa [#allocation3], 1
    %s397 = scalar_lea.sflag [#allocation3], 1
    %398 = vsyncpa %s397, 1
    %399 = vsyncpa [#allocation4], 1
    %s400 = scalar_lea.sflag [#allocation4], 1
    %401 = vsyncpa %s400, 1
    %402 = vsyncpa [#allocation5], 1
    %s403 = scalar_lea.sflag [#allocation5], 1
    %404 = vsyncpa %s403, 1

</llo_original>
